<compile_context>
chip_gen: v5e
topology: v5e:2x2
jax: 0.10.0
libtpu: 0.0.40
codegen_flags: <defaults>
</compile_context>

<pallas_src>
import functools

import jax
import jax.numpy as jnp
import numpy as np
from jax.experimental import pallas as pl
from jax.experimental.pallas import tpu as pltpu


def _qkv_proj_kernel(x_ref, w_ref, o_ref):
    # x block: (TN, C); w: (C, 3C) bf16 with the q columns pre-scaled.
    x = x_ref[...].astype(w_ref.dtype)                 # cast x once to bf16
    o_ref[...] = jnp.dot(
        x, w_ref[...], preferred_element_type=jnp.float32
    ).astype(o_ref.dtype)                              # one wide lane-dense store


def _flash_attn_proj_kernel(q_ref, k_ref, v_ref, wp_ref, bp_ref, o_ref,
                            m_sc, l_sc, acc_sc, *, num_heads):
    # q block: (TQ, C); k/v blocks: (TK, C); all bf16, scale folded into q.
    ki = pl.program_id(2)
    tq, C = q_ref.shape
    tk = k_ref.shape[0]
    H = num_heads
    D = C // H

    @pl.when(ki == 0)
    def _init():
        m_sc[...] = jnp.full(m_sc.shape, -jnp.inf, dtype=m_sc.dtype)
        l_sc[...] = jnp.zeros(l_sc.shape, dtype=l_sc.dtype)
        acc_sc[...] = jnp.zeros(acc_sc.shape, dtype=acc_sc.dtype)

    # Heads become a batch dim of batched MXU matmuls (bf16 in, f32 acc).
    q4 = q_ref[...].reshape(tq, H, D)
    k4 = k_ref[...].reshape(tk, H, D)
    v4 = v_ref[...].reshape(tk, H, D)

    # Scores for this (q tile, kv tile): (H, TQ, TK) in f32.
    s = jnp.einsum('qhd,khd->hqk', q4, k4,
                   preferred_element_type=jnp.float32)

    # Online softmax (flash-style) in f32 on the VPU.
    m_prev = m_sc[...]                                          # (H, TQ, 1)
    m_new = jnp.maximum(m_prev, jnp.max(s, axis=-1, keepdims=True))
    alpha = jnp.exp(m_prev - m_new)
    p = jnp.exp(s - m_new)
    l_sc[...] = alpha * l_sc[...] + jnp.sum(p, axis=-1, keepdims=True)
    acc_sc[...] = alpha * acc_sc[...] + jnp.einsum(
        'hqk,khd->hqd', p.astype(v4.dtype), v4,
        preferred_element_type=jnp.float32)                     # (H, TQ, D)
    m_sc[...] = m_new

    @pl.when(ki == pl.num_programs(2) - 1)
    def _finalize():
        inv_l = pl.reciprocal(l_sc[...], approx=True)           # EUP slot
        out = acc_sc[...] * inv_l                               # (H, TQ, D) f32
        # (attn @ v).transpose(1, 2).reshape(B, N, C): one relayout per q tile.
        out = jnp.transpose(out, (1, 0, 2)).reshape(tq, C)
        y = jnp.dot(out.astype(wp_ref.dtype), wp_ref[...],
                    preferred_element_type=jnp.float32)
        y = y + bp_ref[...].astype(jnp.float32)
        o_ref[...] = y.astype(o_ref.dtype)                      # lane-dense store


def _pick_tile(n, target):
    """Largest multiple-of-8 divisor of n that is <= target, else n (full dim)."""
    if n <= target:
        return n
    for t in range(target, 0, -8):
        if n % t == 0:
            return t
    return n


def _vmem_limit_bytes():
    """Generation-aware VMEM limit: physical capacity minus headroom."""
    try:
        cap = getattr(pltpu.get_tpu_info(), "vmem_capacity_bytes", None)
    except Exception:
        cap = None
    if not cap:
        return None                              # fall back to compiler default
    headroom = 16 * 1024 * 1024                  # compiler scratch / semaphores
    return int(min(cap, max(cap - headroom, 32 * 1024 * 1024)))


def attention_pallas(x, w_qkv, w_proj, b_proj, *, num_heads,
                     tq_target=128, tk_target=128):
    """Forward pass of the ViT Attention module.

    x:      (B, N, C)
    w_qkv:  (C, 3C)  transposed nn.Linear weight (y = x @ W), q|k|v columns
    w_proj: (C, C)   transposed nn.Linear weight
    b_proj: (1, C)
    """
    B, N, C = x.shape
    assert C % num_heads == 0, "dim must be divisible by num_heads"
    assert C % 128 == 0, "C must be a multiple of 128 (lane-dense layout)"
    H = num_heads
    D = C // H
    scale = D ** (-0.5)

    tq = _pick_tile(N, tq_target)
    tk = _pick_tile(N, tk_target)

    # bf16 MXU operands on every generation; f32 accumulation in-kernel.
    compute_dtype = jnp.bfloat16

    # Fold the softmax scale into the q columns of the QKV weight in f32
    # *before* the bf16 cast (avoids double rounding and the per-step VPU mul).
    w_qkv_f32 = w_qkv.astype(jnp.float32)
    w_qkv_f32 = w_qkv_f32.at[:, :C].multiply(jnp.float32(scale))
    w_qkv_c = w_qkv_f32.astype(compute_dtype)
    w_proj_c = w_proj.astype(compute_dtype)
    b_proj_f32 = b_proj.astype(jnp.float32)

    vmem_limit = _vmem_limit_bytes()
    resident = pl.Buffered(1)     # constant index maps -> single-buffer weights

    # ---- Pass 1: fused QKV projection -> lane-dense (B, N, 3C) bf16 slab ----
    qkv = pl.pallas_call(
        _qkv_proj_kernel,
        out_shape=jax.ShapeDtypeStruct((B, N, 3 * C), compute_dtype),
        grid_spec=pltpu.PrefetchScalarGridSpec(
            num_scalar_prefetch=0,
            grid=(B, N // tq),
            in_specs=[
                pl.BlockSpec((pl.Squeezed(), tq, C), lambda b, n: (b, n, 0)),
                pl.BlockSpec((C, 3 * C), lambda b, n: (0, 0),
                             pipeline_mode=resident),
            ],
            out_specs=pl.BlockSpec((pl.Squeezed(), tq, 3 * C),
                                   lambda b, n: (b, n, 0)),
        ),
        compiler_params=pltpu.CompilerParams(
            dimension_semantics=("parallel", "parallel"),
            vmem_limit_bytes=vmem_limit),
    )(x, w_qkv_c)

    # ---- Pass 2: flash attention over KV tiles + output projection ----------
    kernel = functools.partial(_flash_attn_proj_kernel, num_heads=num_heads)
    out = pl.pallas_call(
        kernel,
        out_shape=jax.ShapeDtypeStruct((B, N, C), x.dtype),
        grid_spec=pltpu.PrefetchScalarGridSpec(
            num_scalar_prefetch=0,
            grid=(B, N // tq, N // tk),
            in_specs=[
                # q / k / v are lane-offset views of the same qkv slab: the
                # block index along the last axis (0 / 1 / 2) selects the
                # C-wide chunk, so no slicing happens inside the kernel.
                pl.BlockSpec((pl.Squeezed(), tq, C),
                             lambda b, qi, ki: (b, qi, 0)),
                pl.BlockSpec((pl.Squeezed(), tk, C),
                             lambda b, qi, ki: (b, ki, 1)),
                pl.BlockSpec((pl.Squeezed(), tk, C),
                             lambda b, qi, ki: (b, ki, 2)),
                pl.BlockSpec((C, C), lambda b, qi, ki: (0, 0),
                             pipeline_mode=resident),
                pl.BlockSpec((1, C), lambda b, qi, ki: (0, 0),
                             pipeline_mode=resident),
            ],
            out_specs=pl.BlockSpec((pl.Squeezed(), tq, C),
                                   lambda b, qi, ki: (b, qi, 0)),
            scratch_shapes=[
                pltpu.VMEM((H, tq, 1), jnp.float32),   # running row max
                pltpu.VMEM((H, tq, 1), jnp.float32),   # running denominator
                pltpu.VMEM((H, tq, D), jnp.float32),   # running PV accumulator
            ],
        ),
        compiler_params=pltpu.CompilerParams(
            dimension_semantics=("parallel", "parallel", "arbitrary"),
            vmem_limit_bytes=vmem_limit),
    )(qkv, qkv, qkv, w_proj_c, b_proj_f32)
    return out


def attention_ref(x, w_qkv, w_proj, b_proj, *, num_heads):
    """Pure-JAX f32 reference mirroring the PyTorch forward."""
    B, N, C = x.shape
    D = C // num_heads
    scale = D ** (-0.5)
    qkv = jnp.einsum('bnc,cd->bnd', x, w_qkv)                 # (B, N, 3C)
    qkv = qkv.reshape(B, N, 3, num_heads, D).transpose(2, 0, 3, 1, 4)
    q, k, v = qkv[0], qkv[1], qkv[2]                          # (B, H, N, D)
    attn = jnp.einsum('bhnd,bhmd->bhnm', q, k) * scale
    attn = jax.nn.softmax(attn, axis=-1)
    out = jnp.einsum('bhnm,bhmd->bhnd', attn, v)              # (B, H, N, D)
    out = out.transpose(0, 2, 1, 3).reshape(B, N, C)
    return jnp.einsum('bnc,cd->bnd', out, w_proj) + b_proj[0]


if __name__ == "__main__":
    # Small lane-dense test shapes (C multiple of 128).
    B, N, C = 2, 128, 256
    num_heads = 8

    key = jax.random.PRNGKey(0)
    k_x, k_qkv, k_proj_w, k_proj_b = jax.random.split(key, 4)

    x = jax.random.normal(k_x, (B, N, C), dtype=jnp.float32)
    # Deterministic synthetic parameters (no checkpoint loading).
    w_qkv = (jax.random.normal(k_qkv, (C, 3 * C), dtype=jnp.float32)
             * (1.0 / np.sqrt(C)))
    w_proj = (jax.random.normal(k_proj_w, (C, C), dtype=jnp.float32)
              * (1.0 / np.sqrt(C)))
    b_proj = jax.random.normal(k_proj_b, (1, C), dtype=jnp.float32) * 0.01

    out = attention_pallas(x, w_qkv, w_proj, b_proj, num_heads=num_heads)
    out = jax.block_until_ready(out)

    ref = attention_ref(x, w_qkv, w_proj, b_proj, num_heads=num_heads)
    # Tolerance covers bf16 MXU operands + approx (EUP) softmax reciprocal.
    np.testing.assert_allclose(np.asarray(out), np.asarray(ref),
                               rtol=3e-2, atol=3e-2)

    print("KERNEL_OK")
</pallas_src>

<mosaic_0001>
module attributes {stable_mosaic.version = 11 : i64} {
  func.func @_qkv_proj_kernel(%arg0: i32, %arg1: i32, %arg2: memref<1x128x256xf32, #tpu.memory_space<vmem>>, %arg3: memref<256x768xbf16, #tpu.memory_space<vmem>>, %arg4: memref<1x128x768xbf16, #tpu.memory_space<vmem>>) attributes {dimension_semantics = [#tpu.dimension_semantics<parallel>, #tpu.dimension_semantics<parallel>], iteration_bounds = array<i64: 2, 1>, scalar_prefetch = 0 : i64, scratch_operands = 0 : i64, tpu.core_type = #tpu.core_type<tc>, window_params = [{transform_indices = @transform_0, window_bounds = array<i64: 1, 128, 256>}, {pipeline_mode = #tpu.pipeline_mode<synchronous>, transform_indices = @transform_1, window_bounds = array<i64: 256, 768>}, {transform_indices = @transform_2, window_bounds = array<i64: 1, 128, 768>}]} {
    %c0 = arith.constant 0 : index
    %c0_0 = arith.constant 0 : index
    %c0_1 = arith.constant 0 : index
    %0 = vector.load %arg2[%c0, %c0_0, %c0_1] : memref<1x128x256xf32, #tpu.memory_space<vmem>>, vector<1x128x256xf32>
    %1 = vector.shape_cast %0 : vector<1x128x256xf32> to vector<128x256xf32>
    %2 = arith.truncf %1 : vector<128x256xf32> to vector<128x256xbf16>
    %c0_2 = arith.constant 0 : index
    %c0_3 = arith.constant 0 : index
    %3 = vector.load %arg3[%c0_2, %c0_3] : memref<256x768xbf16, #tpu.memory_space<vmem>>, vector<256x768xbf16>
    %cst = arith.constant dense<0.000000e+00> : vector<128x768xf32>
    %4 = tpu.matmul %2, %3, %cst {dimension_numbers = #tpu.dot_dimension_numbers<[1], [0], [0], [1], [0, 0, 1, 1], [], []>} : vector<128x256xbf16>, vector<256x768xbf16>, vector<128x768xf32> -> vector<128x768xf32>
    %5 = arith.truncf %4 : vector<128x768xf32> to vector<128x768xbf16>
    %c0_4 = arith.constant 0 : index
    %c0_5 = arith.constant 0 : index
    %c0_6 = arith.constant 0 : index
    %6 = vector.load %arg4[%c0_4, %c0_5, %c0_6] : memref<1x128x768xbf16, #tpu.memory_space<vmem>>, vector<1x128x768xbf16>
    %7 = vector.shape_cast %6 : vector<1x128x768xbf16> to vector<128x768xbf16>
    %8 = vector.shape_cast %5 : vector<128x768xbf16> to vector<1x128x768xbf16>
    tpu.vector_store %arg4[%c0_4, %c0_5, %c0_6], %8 {strides = array<i32>} : memref<1x128x768xbf16, #tpu.memory_space<vmem>>, vector<1x128x768xbf16>,
    return
  }
  func.func @transform_0(%arg0: i32, %arg1: i32) -> (i32, i32, i32) {
    %c0_i32 = arith.constant 0 : i32
    %c0_i32_0 = arith.constant 0 : i32
    return %arg0, %arg1, %c0_i32 : i32, i32, i32
  }
  func.func @transform_1(%arg0: i32, %arg1: i32) -> (i32, i32) {
    %c0_i32 = arith.constant 0 : i32
    %c0_i32_0 = arith.constant 0 : i32
    %c0_i32_1 = arith.constant 0 : i32
    return %c0_i32, %c0_i32_0 : i32, i32
  }
  func.func @transform_2(%arg0: i32, %arg1: i32) -> (i32, i32, i32) {
    %c0_i32 = arith.constant 0 : i32
    %c0_i32_0 = arith.constant 0 : i32
    return %arg0, %arg1, %c0_i32 : i32, i32, i32
  }
}

</mosaic_0001>

<llo_original>
// kernel: tpu_custom_call.1
$region0: #{tpu_custom_call.1}
  #allocation0 [shape = 'u32[]', space=smem, size = 0x4, offset = 0x4, fixed_abs, tag = 'smem constant byte address 0x4 - core index']
  #allocation1 [shape = 'u32[72,128]{1,0:T(1,128)}', space=vmem, size = 0x9000, scoped, tag = 'internal scratch']
  %s0 = inlined_call_operand.hbm [shape: f32[2,128,256], index: 0, kind: input, shape index: {}]
  %s1 = inlined_call_operand.hbm [shape: bf16[256,768], index: 1, kind: input, shape index: {}]
  %s2 = inlined_call_operand.hbm [shape: bf16[2,128,768], index: 2, kind: output, shape index: {}]
  %s3 = sld [smem:[#allocation0]]
  $region49: #{tpu_custom_call.1} parent=0
    _
  %s5 = ssub.s32 1, %s3
  %s6 = scalar_select 0, %s5, %s3
  $region1: #{tpu_custom_call.1} parent=0
    #allocation2 [shape = 'u8[262144]{0}', space=vmem, size = 0x40000, scoped, tag = 'input window, operand 0']
    #allocation3 [shape = 's32[2]{0}', space=sflag, size = 0x8, scoped, tag = 'scoped memory for tpu_custom_call.1']
    #allocation4 [shape = 's32[2]{0}', space=sflag, size = 0x8, scoped, tag = 'scoped memory for tpu_custom_call.1']
    #allocation5 [shape = 'u8[393216]{0}', space=vmem, size = 0x60000, scoped, tag = 'input window, operand 1, single buffered']
    #allocation6 [shape = 's32[1]{0}', space=sflag, size = 0x4, scoped, tag = 'scoped memory for tpu_custom_call.1']
    #allocation7 [shape = 'u8[393216]{0}', space=vmem, size = 0x60000, scoped, tag = 'output window, operand 0']
    %7 = vsyncpa [#allocation3], 0
    %s8 = scalar_lea.sflag [#allocation3], 1
    %9 = vsyncpa %s8, 0
    %10 = vsyncpa [#allocation6], 0
    %11 = vsyncpa [#allocation4], 0
    %s12 = scalar_lea.sflag [#allocation4], 1
    %13 = vsyncpa %s12, 0
    loop: start=0, step=1, limit=4
    $region2: #{tpu_custom_call.1} parent=1 // loop_pre_header
      _
    $region3: #{tpu_custom_call.1} parent=1 // loop_header
      %s15 = sphi 0, %s19
      %p16 = scmp.ge.s32.totalorder %s15, 4
      %s22 = sphi 0, %s34
      %s23 = sphi 0, %s30
      %s24 = sphi 0, %s22
      %s25 = sphi 0, %s23
      %s26 = sphi 0, %s24
      %s27 = sphi 0, %s25
      %s39 = sphi 0, %s41
      %s42 = sphi 0, %s39
      %s43 = sphi 0, %s42
      %s59 = sphi 0, %s43
      %s63 = sphi 0, %s63
      %s65 = sphi 0, %s63
      %s66 = sphi 0, %s65
      %s80 = sphi 0, %s66
      %s88 = sphi 0, %s90
      %s91 = sphi 0, %s88
      %s92 = sphi 0, %s91
      %s108 = sphi 0, %s92
    $region4: #{tpu_custom_call.1} parent=1 // loop_header_branch
      %18 = sbr.rel (%p16) target = $region8
    $region5: #{tpu_custom_call.1} parent=1 // loop_body
      %s20 = ssub.s32 %s15, 1
      %s21 = ssub.s32 %s15, 2
      %s28 = sadd.s32 1, %s23
      %p29 = scmp.ge.s32.totalorder %s28, 1
      %s30 = scalar_select %p29, 0, %s28
      %s31 = sadd.s32 1, %s22
      %s32 = scalar_select %p29, %s31, %s22
      %p33 = scmp.ge.s32.totalorder %s32, 2
      %s34 = scalar_select %p33, 0, %s32
      %s35 = ssub.s32 %s22, %s34
      %s36 = ssub.s32 %s23, %s30
      %s37 = sor.u32 %s35, %s36
      %p38 = scmp.eq.s32.totalorder %s37, 0
      %s40 = sadd.s32 %s39, 1
      %s41 = scalar_select %p38, %s39, %s40
      %p44 = pneg %p38
      %p45 = scmp.eq.s32.totalorder %s15, 1
      %p46 = por %p44, %p45
      %p47 = scmp.ne.s32.totalorder %s39, %s42
      %p48 = scmp.eq.s32.totalorder %s15, 0
      %p49 = por %p47, %p48
      %p50 = scmp.ne.s32.totalorder %s39, %s42
      %p51 = scmp.eq.s32.totalorder %s20, 1
      %p52 = por %p50, %p51
      %p53 = scmp.ne.s32.totalorder %s42, %s43
      %p54 = scmp.eq.s32.totalorder %s20, 0
      %p55 = por %p53, %p54
      %p56 = scmp.ne.s32.totalorder %s42, %s43
      %p57 = scmp.eq.s32.totalorder %s21, 1
      %p58 = por %p56, %p57
      %p60 = scmp.ne.s32.totalorder %s43, %s59
      %p61 = scmp.eq.s32.totalorder %s21, 0
      %p62 = por %p60, %p61
      %s64 = sadd.s32 %s63, 1
      %p67 = scmp.eq.s32.totalorder %s15, 1
      %p68 = scmp.ne.s32.totalorder %s63, %s65
      %p69 = scmp.eq.s32.totalorder %s15, 0
      %p70 = por %p68, %p69
      %p71 = scmp.ne.s32.totalorder %s63, %s65
      %p72 = scmp.eq.s32.totalorder %s20, 1
      %p73 = por %p71, %p72
      %p74 = scmp.ne.s32.totalorder %s65, %s66
      %p75 = scmp.eq.s32.totalorder %s20, 0
      %p76 = por %p74, %p75
      %p77 = scmp.ne.s32.totalorder %s65, %s66
      %p78 = scmp.eq.s32.totalorder %s21, 1
      %p79 = por %p77, %p78
      %p81 = scmp.ne.s32.totalorder %s66, %s80
      %p82 = scmp.eq.s32.totalorder %s21, 0
      %p83 = por %p81, %p82
      %s84 = ssub.s32 %s22, %s34
      %s85 = ssub.s32 %s23, %s30
      %s86 = sor.u32 %s84, %s85
      %p87 = scmp.eq.s32.totalorder %s86, 0
      %s89 = sadd.s32 %s88, 1
      %s90 = scalar_select %p87, %s88, %s89
      %p93 = pneg %p87
      %p94 = scmp.eq.s32.totalorder %s15, 1
      %p95 = por %p93, %p94
      %p96 = scmp.ne.s32.totalorder %s88, %s91
      %p97 = scmp.eq.s32.totalorder %s15, 0
      %p98 = por %p96, %p97
      %p99 = scmp.ne.s32.totalorder %s88, %s91
      %p100 = scmp.eq.s32.totalorder %s20, 1
      %p101 = por %p99, %p100
      %p102 = scmp.ne.s32.totalorder %s91, %s92
      %p103 = scmp.eq.s32.totalorder %s20, 0
      %p104 = por %p102, %p103
      %p105 = scmp.ne.s32.totalorder %s91, %s92
      %p106 = scmp.eq.s32.totalorder %s21, 1
      %p107 = por %p105, %p106
      %p109 = scmp.ne.s32.totalorder %s92, %s108
      %p110 = scmp.eq.s32.totalorder %s21, 0
      %p111 = por %p109, %p110
      %p112 = scmp.le.s32.totalorder 1, %s15
      %p113 = scmp.lt.s32.totalorder %s15, 3
      %p114 = pnand %p112, %p113
      %p115 = pneg %p114
      // Predicated region
      $region9: #{tpu_custom_call.1} parent=5 // pred_check
        _
      $region10: #{tpu_custom_call.1} parent=5 // pred_check_branch
        %117 = sbr.rel (%p114) target = $region12
      $region11: #{tpu_custom_call.1} parent=5 // pred_region
        %s118 = ssub.s32 %s15, 1
        // Predicated region
        $region13: #{tpu_custom_call.1} parent=11 // pred_check
          %p119 = pneg %p76
        $region14: #{tpu_custom_call.1} parent=11 // pred_check_branch
          %121 = sbr.rel (%p119) target = $region16
        $region15: #{tpu_custom_call.1} parent=11 // pred_region
          %123 = vsyncadd [#allocation6], 0
          %s124 = sshll.u32 %s1, 4
          %s125 = int_to_ptr.hbm [resolvable:$true] %s124
          %s126 = sshll.u32 [#allocation5], 4
          %s127 = int_to_ptr.vmem [resolvable:$true] %s126
          %132 = dma.hbm_to_vmem [thread:$0]  %s125, 12288, %s127, [#allocation6], 384, 384, 24
        $region16: #{tpu_custom_call.1} parent=11 // pred_fallthru
          _
      $region12: #{tpu_custom_call.1} parent=5 // pred_fallthru
        _
      %p133 = scmp.lt.s32.totalorder %s15, 2
      // Predicated region
      $region17: #{tpu_custom_call.1} parent=5 // pred_check
        %p134 = pneg %p133
      $region18: #{tpu_custom_call.1} parent=5 // pred_check_branch
        %136 = sbr.rel (%p134) target = $region20
      $region19: #{tpu_custom_call.1} parent=5 // pred_region
        // Predicated region
        $region21: #{tpu_custom_call.1} parent=19 // pred_check
          %p137 = pneg %p49
        $region22: #{tpu_custom_call.1} parent=19 // pred_check_branch
          %139 = sbr.rel (%p137) target = $region24
        $region23: #{tpu_custom_call.1} parent=19 // pred_region
          %s140 = sand.u32 %s39, 1
          %s141 = scalar_lea.sflag [#allocation3], %s140
          %s142 = sand.u32 %s39, 1
          %s143 = smul.addr %s142, 256
          %s144 = scalar_lea.vmem [#allocation2], %s143
          %s145 = smul.u32 16, %s23
          %147 = vsyncadd %s141, 0
          %s148 = smul.addr %s145, 2
          %s149 = smul.addr %s22, 32
          %s150 = sadd.s32 %s148, %s149
          %s151 = smul.addr %s150, 8
          %s152 = scalar_lea.hbm %s0, %s151
          %s153 = sshll.u32 %s152, 4
          %s154 = int_to_ptr.hbm [resolvable:$true] %s153
          %s155 = sshll.u32 %s144, 4
          %s156 = int_to_ptr.vmem [resolvable:$true] %s155
          %161 = dma.hbm_to_vmem [thread:$0]  %s154, 4096, %s156, %s141, 256, 256, 16
        $region24: #{tpu_custom_call.1} parent=19 // pred_fallthru
          _
      $region20: #{tpu_custom_call.1} parent=5 // pred_fallthru
        _
      %p162 = scmp.le.s32.totalorder 1, %s15
      %p163 = scmp.lt.s32.totalorder %s15, 3
      %p164 = pnand %p162, %p163
      %p165 = pneg %p164
      // Predicated region
      $region25: #{tpu_custom_call.1} parent=5 // pred_check
        _
      $region26: #{tpu_custom_call.1} parent=5 // pred_check_branch
        %167 = sbr.rel (%p164) target = $region28
      $region27: #{tpu_custom_call.1} parent=5 // pred_region
        %s168 = ssub.s32 %s15, 1
        %s169 = sand.u32 %s42, 1
        %s170 = scalar_lea.sflag [#allocation3], %s169
        %s171 = sand.u32 %s42, 1
        %s172 = smul.addr %s171, 256
        %s173 = scalar_lea.vmem [#allocation2], %s172
        // Predicated region
        $region29: #{tpu_custom_call.1} parent=27 // pred_check
          %p174 = pneg %p55
        $region30: #{tpu_custom_call.1} parent=27 // pred_check_branch
          %176 = sbr.rel (%p174) target = $region32
        $region31: #{tpu_custom_call.1} parent=27 // pred_region
          %178 = dma.done %s170, 4096
        $region32: #{tpu_custom_call.1} parent=27 // pred_fallthru
          _
        // Predicated region
        $region33: #{tpu_custom_call.1} parent=27 // pred_check
          %p179 = pneg %p76
        $region34: #{tpu_custom_call.1} parent=27 // pred_check_branch
          %181 = sbr.rel (%p179) target = $region36
        $region35: #{tpu_custom_call.1} parent=27 // pred_region
          %183 = dma.done [#allocation6], 12288
        $region36: #{tpu_custom_call.1} parent=27 // pred_fallthru
          _
        %s184 = sand.u32 %s42, 1
        %s185 = scalar_lea.sflag [#allocation3], %s184
        %s186 = sand.u32 %s42, 1
        %s187 = smul.addr %s186, 256
        %s188 = scalar_lea.vmem [#allocation2], %s187
        %p189 = pneg %p55
        %p190 = pneg %p52
        %p191 = pneg %p76
        %p192 = pneg %p73
        %p193 = pneg %p104
        %p194 = pneg %p101
        %s195 = sand.u32 %s91, 1
        %s196 = scalar_lea.sflag [#allocation4], %s195
        %s197 = sand.u32 %s91, 1
        %s198 = smul.addr %s197, 384
        %s199 = scalar_lea.vmem [#allocation7], %s198
        %s200 = smul.u32 16, %s25
        %s201 = smul.u32 16, %s25
        %v202 = vld [vmem:[%s173] sm:$0xff]
        %v203 = vld [vmem:[%s173 + $0x8] sm:$0xff]
        %v204 = vld [vmem:[%s173 + $0x10] sm:$0xff]
        %v205 = vld [vmem:[%s173 + $0x18] sm:$0xff]
        %v206 = vld [vmem:[%s173 + $0x20] sm:$0xff]
        %v207 = vld [vmem:[%s173 + $0x28] sm:$0xff]
        %v208 = vld [vmem:[%s173 + $0x30] sm:$0xff]
        %v209 = vld [vmem:[%s173 + $0x38] sm:$0xff]
        %v210 = vld [vmem:[%s173 + $0x40] sm:$0xff]
        %v211 = vld [vmem:[%s173 + $0x48] sm:$0xff]
        %v212 = vld [vmem:[%s173 + $0x50] sm:$0xff]
        %v213 = vld [vmem:[%s173 + $0x58] sm:$0xff]
        %v214 = vld [vmem:[%s173 + $0x60] sm:$0xff]
        %v215 = vld [vmem:[%s173 + $0x68] sm:$0xff]
        %v216 = vld [vmem:[%s173 + $0x70] sm:$0xff]
        %v217 = vld [vmem:[%s173 + $0x78] sm:$0xff]
        %v218 = vld [vmem:[%s173 + $0x80] sm:$0xff]
        %v219 = vld [vmem:[%s173 + $0x88] sm:$0xff]
        %v220 = vld [vmem:[%s173 + $0x90] sm:$0xff]
        %v221 = vld [vmem:[%s173 + $0x98] sm:$0xff]
        %v222 = vld [vmem:[%s173 + $0xa0] sm:$0xff]
        %v223 = vld [vmem:[%s173 + $0xa8] sm:$0xff]
        %v224 = vld [vmem:[%s173 + $0xb0] sm:$0xff]
        %v225 = vld [vmem:[%s173 + $0xb8] sm:$0xff]
        %v226 = vld [vmem:[%s173 + $0xc0] sm:$0xff]
        %v227 = vld [vmem:[%s173 + $0xc8] sm:$0xff]
        %v228 = vld [vmem:[%s173 + $0xd0] sm:$0xff]
        %v229 = vld [vmem:[%s173 + $0xd8] sm:$0xff]
        %v230 = vld [vmem:[%s173 + $0xe0] sm:$0xff]
        %v231 = vld [vmem:[%s173 + $0xe8] sm:$0xff]
        %v232 = vld [vmem:[%s173 + $0xf0] sm:$0xff]
        %v233 = vld [vmem:[%s173 + $0xf8] sm:$0xff]
        %v234 = vpack.c.bf16 %v204, %v202
        %v235 = vpack.c.bf16 %v205, %v203
        %v236 = vpack.c.bf16 %v208, %v206
        %v237 = vpack.c.bf16 %v209, %v207
        %v238 = vpack.c.bf16 %v212, %v210
        %v239 = vpack.c.bf16 %v213, %v211
        %v240 = vpack.c.bf16 %v216, %v214
        %v241 = vpack.c.bf16 %v217, %v215
        %v242 = vpack.c.bf16 %v220, %v218
        %v243 = vpack.c.bf16 %v221, %v219
        %v244 = vpack.c.bf16 %v224, %v222
        %v245 = vpack.c.bf16 %v225, %v223
        %v246 = vpack.c.bf16 %v228, %v226
        %v247 = vpack.c.bf16 %v229, %v227
        %v248 = vpack.c.bf16 %v232, %v230
        %v249 = vpack.c.bf16 %v233, %v231
        %v250 = vld [vmem:[#allocation5] sm:$0xff]
        %v251 = vld [vmem:[#allocation5 + $0x8] sm:$0xff]
        %v252 = vld [vmem:[#allocation5 + $0x10] sm:$0xff]
        %v253 = vld [vmem:[#allocation5 + $0x18] sm:$0xff]
        %v254 = vld [vmem:[#allocation5 + $0x20] sm:$0xff]
        %v255 = vld [vmem:[#allocation5 + $0x28] sm:$0xff]
        %v256 = vld [vmem:[#allocation5 + $0x30] sm:$0xff]
        %v257 = vld [vmem:[#allocation5 + $0x38] sm:$0xff]
        %v258 = vld [vmem:[#allocation5 + $0x40] sm:$0xff]
        %v259 = vld [vmem:[#allocation5 + $0x48] sm:$0xff]
        %v260 = vld [vmem:[#allocation5 + $0x50] sm:$0xff]
        %v261 = vld [vmem:[#allocation5 + $0x58] sm:$0xff]
        %v262 = vld [vmem:[#allocation5 + $0x60] sm:$0xff]
        %v263 = vld [vmem:[#allocation5 + $0x68] sm:$0xff]
        %v264 = vld [vmem:[#allocation5 + $0x70] sm:$0xff]
        %v265 = vld [vmem:[#allocation5 + $0x78] sm:$0xff]
        %v266 = vld [vmem:[#allocation5 + $0x80] sm:$0xff]
        %v267 = vld [vmem:[#allocation5 + $0x88] sm:$0xff]
        %v268 = vld [vmem:[#allocation5 + $0x90] sm:$0xff]
        %v269 = vld [vmem:[#allocation5 + $0x98] sm:$0xff]
        %v270 = vld [vmem:[#allocation5 + $0xa0] sm:$0xff]
        %v271 = vld [vmem:[#allocation5 + $0xa8] sm:$0xff]
        %v272 = vld [vmem:[#allocation5 + $0xb0] sm:$0xff]
        %v273 = vld [vmem:[#allocation5 + $0xb8] sm:$0xff]
        %v274 = vld [vmem:[#allocation5 + $0xc0] sm:$0xff]
        %v275 = vld [vmem:[#allocation5 + $0xc8] sm:$0xff]
        %v276 = vld [vmem:[#allocation5 + $0xd0] sm:$0xff]
        %v277 = vld [vmem:[#allocation5 + $0xd8] sm:$0xff]
        %v278 = vld [vmem:[#allocation5 + $0xe0] sm:$0xff]
        %v279 = vld [vmem:[#allocation5 + $0xe8] sm:$0xff]
        %v280 = vld [vmem:[#allocation5 + $0xf0] sm:$0xff]
        %v281 = vld [vmem:[#allocation5 + $0xf8] sm:$0xff]
        %v282 = vld [vmem:[#allocation5 + $0x100] sm:$0xff]
        %v283 = vld [vmem:[#allocation5 + $0x108] sm:$0xff]
        %v284 = vld [vmem:[#allocation5 + $0x110] sm:$0xff]
        %v285 = vld [vmem:[#allocation5 + $0x118] sm:$0xff]
        %v286 = vld [vmem:[#allocation5 + $0x120] sm:$0xff]
        %v287 = vld [vmem:[#allocation5 + $0x128] sm:$0xff]
        %v288 = vld [vmem:[#allocation5 + $0x130] sm:$0xff]
        %v289 = vld [vmem:[#allocation5 + $0x138] sm:$0xff]
        %v290 = vld [vmem:[#allocation5 + $0x140] sm:$0xff]
        %v291 = vld [vmem:[#allocation5 + $0x148] sm:$0xff]
        %v292 = vld [vmem:[#allocation5 + $0x150] sm:$0xff]
        %v293 = vld [vmem:[#allocation5 + $0x158] sm:$0xff]
        %v294 = vld [vmem:[#allocation5 + $0x160] sm:$0xff]
        %v295 = vld [vmem:[#allocation5 + $0x168] sm:$0xff]
        %v296 = vld [vmem:[#allocation5 + $0x170] sm:$0xff]
        %v297 = vld [vmem:[#allocation5 + $0x178] sm:$0xff]
        %v298 = vld [vmem:[#allocation5 + $0x180] sm:$0xff]
        %v299 = vld [vmem:[#allocation5 + $0x188] sm:$0xff]
        %v300 = vld [vmem:[#allocation5 + $0x190] sm:$0xff]
        %v301 = vld [vmem:[#allocation5 + $0x198] sm:$0xff]
        %v302 = vld [vmem:[#allocation5 + $0x1a0] sm:$0xff]
        %v303 = vld [vmem:[#allocation5 + $0x1a8] sm:$0xff]
        %v304 = vld [vmem:[#allocation5 + $0x1b0] sm:$0xff]
        %v305 = vld [vmem:[#allocation5 + $0x1b8] sm:$0xff]
        %v306 = vld [vmem:[#allocation5 + $0x1c0] sm:$0xff]
        %v307 = vld [vmem:[#allocation5 + $0x1c8] sm:$0xff]
        %v308 = vld [vmem:[#allocation5 + $0x1d0] sm:$0xff]
        %v309 = vld [vmem:[#allocation5 + $0x1d8] sm:$0xff]
        %v310 = vld [vmem:[#allocation5 + $0x1e0] sm:$0xff]
        %v311 = vld [vmem:[#allocation5 + $0x1e8] sm:$0xff]
        %v312 = vld [vmem:[#allocation5 + $0x1f0] sm:$0xff]
        %v313 = vld [vmem:[#allocation5 + $0x1f8] sm:$0xff]
        %v314 = vld [vmem:[#allocation5 + $0x200] sm:$0xff]
        %v315 = vld [vmem:[#allocation5 + $0x208] sm:$0xff]
        %v316 = vld [vmem:[#allocation5 + $0x210] sm:$0xff]
        %v317 = vld [vmem:[#allocation5 + $0x218] sm:$0xff]
        %v318 = vld [vmem:[#allocation5 + $0x220] sm:$0xff]
        %v319 = vld [vmem:[#allocation5 + $0x228] sm:$0xff]
        %v320 = vld [vmem:[#allocation5 + $0x230] sm:$0xff]
        %v321 = vld [vmem:[#allocation5 + $0x238] sm:$0xff]
        %v322 = vld [vmem:[#allocation5 + $0x240] sm:$0xff]
        %v323 = vld [vmem:[#allocation5 + $0x248] sm:$0xff]
        %v324 = vld [vmem:[#allocation5 + $0x250] sm:$0xff]
        %v325 = vld [vmem:[#allocation5 + $0x258] sm:$0xff]
        %v326 = vld [vmem:[#allocation5 + $0x260] sm:$0xff]
        %v327 = vld [vmem:[#allocation5 + $0x268] sm:$0xff]
        %v328 = vld [vmem:[#allocation5 + $0x270] sm:$0xff]
        %v329 = vld [vmem:[#allocation5 + $0x278] sm:$0xff]
        %v330 = vld [vmem:[#allocation5 + $0x280] sm:$0xff]
        %v331 = vld [vmem:[#allocation5 + $0x288] sm:$0xff]
        %v332 = vld [vmem:[#allocation5 + $0x290] sm:$0xff]
        %v333 = vld [vmem:[#allocation5 + $0x298] sm:$0xff]
        %v334 = vld [vmem:[#allocation5 + $0x2a0] sm:$0xff]
        %v335 = vld [vmem:[#allocation5 + $0x2a8] sm:$0xff]
        %v336 = vld [vmem:[#allocation5 + $0x2b0] sm:$0xff]
        %v337 = vld [vmem:[#allocation5 + $0x2b8] sm:$0xff]
        %v338 = vld [vmem:[#allocation5 + $0x2c0] sm:$0xff]
        %v339 = vld [vmem:[#allocation5 + $0x2c8] sm:$0xff]
        %v340 = vld [vmem:[#allocation5 + $0x2d0] sm:$0xff]
        %v341 = vld [vmem:[#allocation5 + $0x2d8] sm:$0xff]
        %v342 = vld [vmem:[#allocation5 + $0x2e0] sm:$0xff]
        %v343 = vld [vmem:[#allocation5 + $0x2e8] sm:$0xff]
        %v344 = vld [vmem:[#allocation5 + $0x2f0] sm:$0xff]
        %v345 = vld [vmem:[#allocation5 + $0x2f8] sm:$0xff]
        %v442 = vunpack.c.l.b16 %v250
        %v443 = vunpack.c.h.b16 %v250
        %v444 = vunpack.c.l.b16 %v251
        %v445 = vunpack.c.h.b16 %v251
        %v446 = vunpack.c.l.b16 %v252
        %v447 = vunpack.c.h.b16 %v252
        %v448 = vunpack.c.l.b16 %v253
        %v449 = vunpack.c.h.b16 %v253
        %v450 = vunpack.c.l.b16 %v254
        %v451 = vunpack.c.h.b16 %v254
        %v452 = vunpack.c.l.b16 %v255
        %v453 = vunpack.c.h.b16 %v255
        %v454 = vunpack.c.l.b16 %v256
        %v455 = vunpack.c.h.b16 %v256
        %v456 = vunpack.c.l.b16 %v257
        %v457 = vunpack.c.h.b16 %v257
        %v458 = vunpack.c.l.b16 %v258
        %v459 = vunpack.c.h.b16 %v258
        %v460 = vunpack.c.l.b16 %v259
        %v461 = vunpack.c.h.b16 %v259
        %v462 = vunpack.c.l.b16 %v260
        %v463 = vunpack.c.h.b16 %v260
        %v464 = vunpack.c.l.b16 %v261
        %v465 = vunpack.c.h.b16 %v261
        %v466 = vunpack.c.l.b16 %v262
        %v467 = vunpack.c.h.b16 %v262
        %v468 = vunpack.c.l.b16 %v263
        %v469 = vunpack.c.h.b16 %v263
        %v470 = vunpack.c.l.b16 %v264
        %v471 = vunpack.c.h.b16 %v264
        %v472 = vunpack.c.l.b16 %v265
        %v473 = vunpack.c.h.b16 %v265
        %v474 = vunpack.c.l.b16 %v266
        %v475 = vunpack.c.h.b16 %v266
        %v476 = vunpack.c.l.b16 %v267
        %v477 = vunpack.c.h.b16 %v267
        %v478 = vunpack.c.l.b16 %v268
        %v479 = vunpack.c.h.b16 %v268
        %v480 = vunpack.c.l.b16 %v269
        %v481 = vunpack.c.h.b16 %v269
        %v482 = vunpack.c.l.b16 %v270
        %v483 = vunpack.c.h.b16 %v270
        %v484 = vunpack.c.l.b16 %v271
        %v485 = vunpack.c.h.b16 %v271
        %v486 = vunpack.c.l.b16 %v272
        %v487 = vunpack.c.h.b16 %v272
        %v488 = vunpack.c.l.b16 %v273
        %v489 = vunpack.c.h.b16 %v273
        %v490 = vunpack.c.l.b16 %v274
        %v491 = vunpack.c.h.b16 %v274
        %v492 = vunpack.c.l.b16 %v275
        %v493 = vunpack.c.h.b16 %v275
        %v494 = vunpack.c.l.b16 %v276
        %v495 = vunpack.c.h.b16 %v276
        %v496 = vunpack.c.l.b16 %v277
        %v497 = vunpack.c.h.b16 %v277
        %v498 = vunpack.c.l.b16 %v278
        %v499 = vunpack.c.h.b16 %v278
        %v500 = vunpack.c.l.b16 %v279
        %v501 = vunpack.c.h.b16 %v279
        %v502 = vunpack.c.l.b16 %v280
        %v503 = vunpack.c.h.b16 %v280
        %v504 = vunpack.c.l.b16 %v281
        %v505 = vunpack.c.h.b16 %v281
        %v506 = vunpack.c.l.b16 %v282
        %v507 = vunpack.c.h.b16 %v282
        %v508 = vunpack.c.l.b16 %v283
        %v509 = vunpack.c.h.b16 %v283
        %v510 = vunpack.c.l.b16 %v284
        %v511 = vunpack.c.h.b16 %v284
        %v512 = vunpack.c.l.b16 %v285
        %v513 = vunpack.c.h.b16 %v285
        %v514 = vunpack.c.l.b16 %v286
        %v515 = vunpack.c.h.b16 %v286
        %v516 = vunpack.c.l.b16 %v287
        %v517 = vunpack.c.h.b16 %v287
        %v518 = vunpack.c.l.b16 %v288
        %v519 = vunpack.c.h.b16 %v288
        %v520 = vunpack.c.l.b16 %v289
        %v521 = vunpack.c.h.b16 %v289
        %v522 = vunpack.c.l.b16 %v290
        %v523 = vunpack.c.h.b16 %v290
        %v524 = vunpack.c.l.b16 %v291
        %v525 = vunpack.c.h.b16 %v291
        %v526 = vunpack.c.l.b16 %v292
        %v527 = vunpack.c.h.b16 %v292
        %v528 = vunpack.c.l.b16 %v293
        %v529 = vunpack.c.h.b16 %v293
        %v530 = vunpack.c.l.b16 %v294
        %v531 = vunpack.c.h.b16 %v294
        %v532 = vunpack.c.l.b16 %v295
        %v533 = vunpack.c.h.b16 %v295
        %v534 = vunpack.c.l.b16 %v296
        %v535 = vunpack.c.h.b16 %v296
        %v536 = vunpack.c.l.b16 %v297
        %v537 = vunpack.c.h.b16 %v297
        %v538 = vunpack.c.l.b16 %v298
        %v539 = vunpack.c.h.b16 %v298
        %v540 = vunpack.c.l.b16 %v299
        %v541 = vunpack.c.h.b16 %v299
        %v542 = vunpack.c.l.b16 %v300
        %v543 = vunpack.c.h.b16 %v300
        %v544 = vunpack.c.l.b16 %v301
        %v545 = vunpack.c.h.b16 %v301
        %v546 = vunpack.c.l.b16 %v302
        %v547 = vunpack.c.h.b16 %v302
        %v548 = vunpack.c.l.b16 %v303
        %v549 = vunpack.c.h.b16 %v303
        %v550 = vunpack.c.l.b16 %v304
        %v551 = vunpack.c.h.b16 %v304
        %v552 = vunpack.c.l.b16 %v305
        %v553 = vunpack.c.h.b16 %v305
        %v554 = vunpack.c.l.b16 %v306
        %v555 = vunpack.c.h.b16 %v306
        %v556 = vunpack.c.l.b16 %v307
        %v557 = vunpack.c.h.b16 %v307
        %v558 = vunpack.c.l.b16 %v308
        %v559 = vunpack.c.h.b16 %v308
        %v560 = vunpack.c.l.b16 %v309
        %v561 = vunpack.c.h.b16 %v309
        %v562 = vunpack.c.l.b16 %v310
        %v563 = vunpack.c.h.b16 %v310
        %v564 = vunpack.c.l.b16 %v311
        %v565 = vunpack.c.h.b16 %v311
        %v566 = vunpack.c.l.b16 %v312
        %v567 = vunpack.c.h.b16 %v312
        %v568 = vunpack.c.l.b16 %v313
        %v569 = vunpack.c.h.b16 %v313
        %v570 = vunpack.c.l.b16 %v314
        %v571 = vunpack.c.h.b16 %v314
        %v572 = vunpack.c.l.b16 %v315
        %v573 = vunpack.c.h.b16 %v315
        %v574 = vunpack.c.l.b16 %v316
        %v575 = vunpack.c.h.b16 %v316
        %v576 = vunpack.c.l.b16 %v317
        %v577 = vunpack.c.h.b16 %v317
        %v578 = vunpack.c.l.b16 %v318
        %v579 = vunpack.c.h.b16 %v318
        %v580 = vunpack.c.l.b16 %v319
        %v581 = vunpack.c.h.b16 %v319
        %v582 = vunpack.c.l.b16 %v320
        %v583 = vunpack.c.h.b16 %v320
        %v584 = vunpack.c.l.b16 %v321
        %v585 = vunpack.c.h.b16 %v321
        %v586 = vunpack.c.l.b16 %v322
        %v587 = vunpack.c.h.b16 %v322
        %v588 = vunpack.c.l.b16 %v323
        %v589 = vunpack.c.h.b16 %v323
        %v590 = vunpack.c.l.b16 %v324
        %v591 = vunpack.c.h.b16 %v324
        %v592 = vunpack.c.l.b16 %v325
        %v593 = vunpack.c.h.b16 %v325
        %v594 = vunpack.c.l.b16 %v326
        %v595 = vunpack.c.h.b16 %v326
        %v596 = vunpack.c.l.b16 %v327
        %v597 = vunpack.c.h.b16 %v327
        %v598 = vunpack.c.l.b16 %v328
        %v599 = vunpack.c.h.b16 %v328
        %v600 = vunpack.c.l.b16 %v329
        %v601 = vunpack.c.h.b16 %v329
        %v602 = vunpack.c.l.b16 %v330
        %v603 = vunpack.c.h.b16 %v330
        %v604 = vunpack.c.l.b16 %v331
        %v605 = vunpack.c.h.b16 %v331
        %v606 = vunpack.c.l.b16 %v332
        %v607 = vunpack.c.h.b16 %v332
        %v608 = vunpack.c.l.b16 %v333
        %v609 = vunpack.c.h.b16 %v333
        %v610 = vunpack.c.l.b16 %v334
        %v611 = vunpack.c.h.b16 %v334
        %v612 = vunpack.c.l.b16 %v335
        %v613 = vunpack.c.h.b16 %v335
        %v614 = vunpack.c.l.b16 %v336
        %v615 = vunpack.c.h.b16 %v336
        %v616 = vunpack.c.l.b16 %v337
        %v617 = vunpack.c.h.b16 %v337
        %v618 = vunpack.c.l.b16 %v338
        %v619 = vunpack.c.h.b16 %v338
        %v620 = vunpack.c.l.b16 %v339
        %v621 = vunpack.c.h.b16 %v339
        %v622 = vunpack.c.l.b16 %v340
        %v623 = vunpack.c.h.b16 %v340
        %v624 = vunpack.c.l.b16 %v341
        %v625 = vunpack.c.h.b16 %v341
        %v626 = vunpack.c.l.b16 %v342
        %v627 = vunpack.c.h.b16 %v342
        %v628 = vunpack.c.l.b16 %v343
        %v629 = vunpack.c.h.b16 %v343
        %v630 = vunpack.c.l.b16 %v344
        %v631 = vunpack.c.h.b16 %v344
        %v632 = vunpack.c.l.b16 %v345
        %v633 = vunpack.c.h.b16 %v345
        %v634 = vpack.c.b16 %v448, %v442
        %v635 = vpack.c.b16 %v449, %v443
        %v636 = vpack.c.b16 %v450, %v444
        %v637 = vpack.c.b16 %v451, %v445
        %v638 = vpack.c.b16 %v452, %v446
        %v639 = vpack.c.b16 %v453, %v447
        %v640 = vpack.c.b16 %v460, %v454
        %v641 = vpack.c.b16 %v461, %v455
        %v642 = vpack.c.b16 %v462, %v456
        %v643 = vpack.c.b16 %v463, %v457
        %v644 = vpack.c.b16 %v464, %v458
        %v645 = vpack.c.b16 %v465, %v459
        %v646 = vpack.c.b16 %v472, %v466
        %v647 = vpack.c.b16 %v473, %v467
        %v648 = vpack.c.b16 %v474, %v468
        %v649 = vpack.c.b16 %v475, %v469
        %v650 = vpack.c.b16 %v476, %v470
        %v651 = vpack.c.b16 %v477, %v471
        %v652 = vpack.c.b16 %v484, %v478
        %v653 = vpack.c.b16 %v485, %v479
        %v654 = vpack.c.b16 %v486, %v480
        %v655 = vpack.c.b16 %v487, %v481
        %v656 = vpack.c.b16 %v488, %v482
        %v657 = vpack.c.b16 %v489, %v483
        %v658 = vpack.c.b16 %v496, %v490
        %v659 = vpack.c.b16 %v497, %v491
        %v660 = vpack.c.b16 %v498, %v492
        %v661 = vpack.c.b16 %v499, %v493
        %v662 = vpack.c.b16 %v500, %v494
        %v663 = vpack.c.b16 %v501, %v495
        %v664 = vpack.c.b16 %v508, %v502
        %v665 = vpack.c.b16 %v509, %v503
        %v666 = vpack.c.b16 %v510, %v504
        %v667 = vpack.c.b16 %v511, %v505
        %v668 = vpack.c.b16 %v512, %v506
        %v669 = vpack.c.b16 %v513, %v507
        %v670 = vpack.c.b16 %v520, %v514
        %v671 = vpack.c.b16 %v521, %v515
        %v672 = vpack.c.b16 %v522, %v516
        %v673 = vpack.c.b16 %v523, %v517
        %v674 = vpack.c.b16 %v524, %v518
        %v675 = vpack.c.b16 %v525, %v519
        %v676 = vpack.c.b16 %v532, %v526
        %v677 = vpack.c.b16 %v533, %v527
        %v678 = vpack.c.b16 %v534, %v528
        %v679 = vpack.c.b16 %v535, %v529
        %v680 = vpack.c.b16 %v536, %v530
        %v681 = vpack.c.b16 %v537, %v531
        %v682 = vpack.c.b16 %v544, %v538
        %v683 = vpack.c.b16 %v545, %v539
        %v684 = vpack.c.b16 %v546, %v540
        %v685 = vpack.c.b16 %v547, %v541
        %v686 = vpack.c.b16 %v548, %v542
        %v687 = vpack.c.b16 %v549, %v543
        %v688 = vpack.c.b16 %v556, %v550
        %v689 = vpack.c.b16 %v557, %v551
        %v690 = vpack.c.b16 %v558, %v552
        %v691 = vpack.c.b16 %v559, %v553
        %v692 = vpack.c.b16 %v560, %v554
        %v693 = vpack.c.b16 %v561, %v555
        %v694 = vpack.c.b16 %v568, %v562
        %v695 = vpack.c.b16 %v569, %v563
        %v696 = vpack.c.b16 %v570, %v564
        %v697 = vpack.c.b16 %v571, %v565
        %v698 = vpack.c.b16 %v572, %v566
        %v699 = vpack.c.b16 %v573, %v567
        %v700 = vpack.c.b16 %v580, %v574
        %v701 = vpack.c.b16 %v581, %v575
        %v702 = vpack.c.b16 %v582, %v576
        %v703 = vpack.c.b16 %v583, %v577
        %v704 = vpack.c.b16 %v584, %v578
        %v705 = vpack.c.b16 %v585, %v579
        %v706 = vpack.c.b16 %v592, %v586
        %v707 = vpack.c.b16 %v593, %v587
        %v708 = vpack.c.b16 %v594, %v588
        %v709 = vpack.c.b16 %v595, %v589
        %v710 = vpack.c.b16 %v596, %v590
        %v711 = vpack.c.b16 %v597, %v591
        %v712 = vpack.c.b16 %v604, %v598
        %v713 = vpack.c.b16 %v605, %v599
        %v714 = vpack.c.b16 %v606, %v600
        %v715 = vpack.c.b16 %v607, %v601
        %v716 = vpack.c.b16 %v608, %v602
        %v717 = vpack.c.b16 %v609, %v603
        %v718 = vpack.c.b16 %v616, %v610
        %v719 = vpack.c.b16 %v617, %v611
        %v720 = vpack.c.b16 %v618, %v612
        %v721 = vpack.c.b16 %v619, %v613
        %v722 = vpack.c.b16 %v620, %v614
        %v723 = vpack.c.b16 %v621, %v615
        %v724 = vpack.c.b16 %v628, %v622
        %v725 = vpack.c.b16 %v629, %v623
        %v726 = vpack.c.b16 %v630, %v624
        %v727 = vpack.c.b16 %v631, %v625
        %v728 = vpack.c.b16 %v632, %v626
        %v729 = vpack.c.b16 %v633, %v627
        %826 = vmatpush.bf16.msra.mxu0 %v676
        %827 = vmatpush.bf16.msra.mxu0 %v670
        %828 = vmatpush.bf16.msra.mxu0 %v664
        %829 = vmatpush.bf16.msra.mxu0 %v658
        %830 = vmatpush.bf16.msra.mxu0 %v652
        %831 = vmatpush.bf16.msra.mxu0 %v646
        %832 = vmatpush.bf16.msra.mxu0 %v640
        %833 = vmatpush.bf16.msra.mxu0 %v634
        %834 = vmatmul.bf16.gmra.mxu0 %v234
        %v835 = vpop.f32.mrf.mxu0
        %v836 = vadd.f32 0.0, %v835
        %v837 = vpop.f32.mrf.mxu0
        %v838 = vadd.f32 0.0, %v837
        %839 = vmatmul.bf16.gmra.mxu0 %v236
        %v840 = vpop.f32.mrf.mxu0
        %v841 = vadd.f32 0.0, %v840
        %v842 = vpop.f32.mrf.mxu0
        %v843 = vadd.f32 0.0, %v842
        %844 = vmatmul.bf16.gmra.mxu0 %v238
        %v845 = vpop.f32.mrf.mxu0
        %v846 = vadd.f32 0.0, %v845
        %v847 = vpop.f32.mrf.mxu0
        %v848 = vadd.f32 0.0, %v847
        %849 = vmatmul.bf16.gmra.mxu0 %v240
        %v850 = vpop.f32.mrf.mxu0
        %v851 = vadd.f32 0.0, %v850
        %v852 = vpop.f32.mrf.mxu0
        %v853 = vadd.f32 0.0, %v852
        %854 = vmatmul.bf16.gmra.mxu0 %v242
        %v855 = vpop.f32.mrf.mxu0
        %v856 = vadd.f32 0.0, %v855
        %v857 = vpop.f32.mrf.mxu0
        %v858 = vadd.f32 0.0, %v857
        %859 = vmatmul.bf16.gmra.mxu0 %v244
        %v860 = vpop.f32.mrf.mxu0
        %v861 = vadd.f32 0.0, %v860
        %v862 = vpop.f32.mrf.mxu0
        %v863 = vadd.f32 0.0, %v862
        %864 = vmatmul.bf16.gmra.mxu0 %v246
        %v865 = vpop.f32.mrf.mxu0
        %v866 = vadd.f32 0.0, %v865
        %v867 = vpop.f32.mrf.mxu0
        %v868 = vadd.f32 0.0, %v867
        %869 = vmatmul.bf16.gmra.mxu0 %v248
        %v870 = vpop.f32.mrf.mxu0
        %v871 = vadd.f32 0.0, %v870
        %v872 = vpop.f32.mrf.mxu0
        %v873 = vadd.f32 0.0, %v872
        %874 = vdwg.mxu0
        %875 = vmatpush.bf16.msra.mxu0 %v724
        %876 = vmatpush.bf16.msra.mxu0 %v718
        %877 = vmatpush.bf16.msra.mxu0 %v712
        %878 = vmatpush.bf16.msra.mxu0 %v706
        %879 = vmatpush.bf16.msra.mxu0 %v700
        %880 = vmatpush.bf16.msra.mxu0 %v694
        %881 = vmatpush.bf16.msra.mxu0 %v688
        %882 = vmatpush.bf16.msra.mxu0 %v682
        %883 = vmatmul.bf16.gmra.mxu0 %v235
        %v884 = vpop.f32.mrf.mxu0
        %v885 = vadd.f32 %v836, %v884
        %v886 = vpop.f32.mrf.mxu0
        %v887 = vadd.f32 %v838, %v886
        %888 = vmatmul.bf16.gmra.mxu0 %v237
        %v889 = vpop.f32.mrf.mxu0
        %v890 = vadd.f32 %v841, %v889
        %v891 = vpop.f32.mrf.mxu0
        %v892 = vadd.f32 %v843, %v891
        %893 = vmatmul.bf16.gmra.mxu0 %v239
        %v894 = vpop.f32.mrf.mxu0
        %v895 = vadd.f32 %v846, %v894
        %v896 = vpop.f32.mrf.mxu0
        %v897 = vadd.f32 %v848, %v896
        %898 = vmatmul.bf16.gmra.mxu0 %v241
        %v899 = vpop.f32.mrf.mxu0
        %v900 = vadd.f32 %v851, %v899
        %v901 = vpop.f32.mrf.mxu0
        %v902 = vadd.f32 %v853, %v901
        %903 = vmatmul.bf16.gmra.mxu0 %v243
        %v904 = vpop.f32.mrf.mxu0
        %v905 = vadd.f32 %v856, %v904
        %v906 = vpop.f32.mrf.mxu0
        %v907 = vadd.f32 %v858, %v906
        %908 = vmatmul.bf16.gmra.mxu0 %v245
        %v909 = vpop.f32.mrf.mxu0
        %v910 = vadd.f32 %v861, %v909
        %v911 = vpop.f32.mrf.mxu0
        %v912 = vadd.f32 %v863, %v911
        %913 = vmatmul.bf16.gmra.mxu0 %v247
        %v914 = vpop.f32.mrf.mxu0
        %v915 = vadd.f32 %v866, %v914
        %v916 = vpop.f32.mrf.mxu0
        %v917 = vadd.f32 %v868, %v916
        %918 = vmatmul.bf16.gmra.mxu0 %v249
        %v919 = vpop.f32.mrf.mxu0
        %v920 = vadd.f32 %v871, %v919
        %v921 = vpop.f32.mrf.mxu0
        %v922 = vadd.f32 %v873, %v921
        %923 = vdwg.mxu0
        %924 = vmatpush.bf16.msra.mxu0 %v677
        %925 = vmatpush.bf16.msra.mxu0 %v671
        %926 = vmatpush.bf16.msra.mxu0 %v665
        %927 = vmatpush.bf16.msra.mxu0 %v659
        %928 = vmatpush.bf16.msra.mxu0 %v653
        %929 = vmatpush.bf16.msra.mxu0 %v647
        %930 = vmatpush.bf16.msra.mxu0 %v641
        %931 = vmatpush.bf16.msra.mxu0 %v635
        %932 = vmatmul.bf16.gmra.mxu0 %v234
        %v933 = vpop.f32.mrf.mxu0
        %v934 = vadd.f32 0.0, %v933
        %v935 = vpop.f32.mrf.mxu0
        %v936 = vadd.f32 0.0, %v935
        %937 = vmatmul.bf16.gmra.mxu0 %v236
        %v938 = vpop.f32.mrf.mxu0
        %v939 = vadd.f32 0.0, %v938
        %v940 = vpop.f32.mrf.mxu0
        %v941 = vadd.f32 0.0, %v940
        %942 = vmatmul.bf16.gmra.mxu0 %v238
        %v943 = vpop.f32.mrf.mxu0
        %v944 = vadd.f32 0.0, %v943
        %v945 = vpop.f32.mrf.mxu0
        %v946 = vadd.f32 0.0, %v945
        %947 = vmatmul.bf16.gmra.mxu0 %v240
        %v948 = vpop.f32.mrf.mxu0
        %v949 = vadd.f32 0.0, %v948
        %v950 = vpop.f32.mrf.mxu0
        %v951 = vadd.f32 0.0, %v950
        %952 = vmatmul.bf16.gmra.mxu0 %v242
        %v953 = vpop.f32.mrf.mxu0
        %v954 = vadd.f32 0.0, %v953
        %v955 = vpop.f32.mrf.mxu0
        %v956 = vadd.f32 0.0, %v955
        %957 = vmatmul.bf16.gmra.mxu0 %v244
        %v958 = vpop.f32.mrf.mxu0
        %v959 = vadd.f32 0.0, %v958
        %v960 = vpop.f32.mrf.mxu0
        %v961 = vadd.f32 0.0, %v960
        %962 = vmatmul.bf16.gmra.mxu0 %v246
        %v963 = vpop.f32.mrf.mxu0
        %v964 = vadd.f32 0.0, %v963
        %v965 = vpop.f32.mrf.mxu0
        %v966 = vadd.f32 0.0, %v965
        %967 = vmatmul.bf16.gmra.mxu0 %v248
        %v968 = vpop.f32.mrf.mxu0
        %v969 = vadd.f32 0.0, %v968
        %v970 = vpop.f32.mrf.mxu0
        %v971 = vadd.f32 0.0, %v970
        %972 = vdwg.mxu0
        %973 = vmatpush.bf16.msra.mxu0 %v725
        %974 = vmatpush.bf16.msra.mxu0 %v719
        %975 = vmatpush.bf16.msra.mxu0 %v713
        %976 = vmatpush.bf16.msra.mxu0 %v707
        %977 = vmatpush.bf16.msra.mxu0 %v701
        %978 = vmatpush.bf16.msra.mxu0 %v695
        %979 = vmatpush.bf16.msra.mxu0 %v689
        %980 = vmatpush.bf16.msra.mxu0 %v683
        %981 = vmatmul.bf16.gmra.mxu0 %v235
        %v982 = vpop.f32.mrf.mxu0
        %v983 = vadd.f32 %v934, %v982
        %v984 = vpop.f32.mrf.mxu0
        %v985 = vadd.f32 %v936, %v984
        %986 = vmatmul.bf16.gmra.mxu0 %v237
        %v987 = vpop.f32.mrf.mxu0
        %v988 = vadd.f32 %v939, %v987
        %v989 = vpop.f32.mrf.mxu0
        %v990 = vadd.f32 %v941, %v989
        %991 = vmatmul.bf16.gmra.mxu0 %v239
        %v992 = vpop.f32.mrf.mxu0
        %v993 = vadd.f32 %v944, %v992
        %v994 = vpop.f32.mrf.mxu0
        %v995 = vadd.f32 %v946, %v994
        %996 = vmatmul.bf16.gmra.mxu0 %v241
        %v997 = vpop.f32.mrf.mxu0
        %v998 = vadd.f32 %v949, %v997
        %v999 = vpop.f32.mrf.mxu0
        %v1000 = vadd.f32 %v951, %v999
        %1001 = vmatmul.bf16.gmra.mxu0 %v243
        %v1002 = vpop.f32.mrf.mxu0
        %v1003 = vadd.f32 %v954, %v1002
        %v1004 = vpop.f32.mrf.mxu0
        %v1005 = vadd.f32 %v956, %v1004
        %1006 = vmatmul.bf16.gmra.mxu0 %v245
        %v1007 = vpop.f32.mrf.mxu0
        %v1008 = vadd.f32 %v959, %v1007
        %v1009 = vpop.f32.mrf.mxu0
        %v1010 = vadd.f32 %v961, %v1009
        %1011 = vmatmul.bf16.gmra.mxu0 %v247
        %v1012 = vpop.f32.mrf.mxu0
        %v1013 = vadd.f32 %v964, %v1012
        %v1014 = vpop.f32.mrf.mxu0
        %v1015 = vadd.f32 %v966, %v1014
        %1016 = vmatmul.bf16.gmra.mxu0 %v249
        %v1017 = vpop.f32.mrf.mxu0
        %v1018 = vadd.f32 %v969, %v1017
        %v1019 = vpop.f32.mrf.mxu0
        %v1020 = vadd.f32 %v971, %v1019
        %1021 = vdwg.mxu0
        %1022 = vmatpush.bf16.msra.mxu0 %v678
        %1023 = vmatpush.bf16.msra.mxu0 %v672
        %1024 = vmatpush.bf16.msra.mxu0 %v666
        %1025 = vmatpush.bf16.msra.mxu0 %v660
        %1026 = vmatpush.bf16.msra.mxu0 %v654
        %1027 = vmatpush.bf16.msra.mxu0 %v648
        %1028 = vmatpush.bf16.msra.mxu0 %v642
        %1029 = vmatpush.bf16.msra.mxu0 %v636
        %1030 = vmatmul.bf16.gmra.mxu0 %v234
        %v1031 = vpop.f32.mrf.mxu0
        %v1032 = vadd.f32 0.0, %v1031
        %v1033 = vpop.f32.mrf.mxu0
        %v1034 = vadd.f32 0.0, %v1033
        %1035 = vmatmul.bf16.gmra.mxu0 %v236
        %v1036 = vpop.f32.mrf.mxu0
        %v1037 = vadd.f32 0.0, %v1036
        %v1038 = vpop.f32.mrf.mxu0
        %v1039 = vadd.f32 0.0, %v1038
        %1040 = vmatmul.bf16.gmra.mxu0 %v238
        %v1041 = vpop.f32.mrf.mxu0
        %v1042 = vadd.f32 0.0, %v1041
        %v1043 = vpop.f32.mrf.mxu0
        %v1044 = vadd.f32 0.0, %v1043
        %1045 = vmatmul.bf16.gmra.mxu0 %v240
        %v1046 = vpop.f32.mrf.mxu0
        %v1047 = vadd.f32 0.0, %v1046
        %v1048 = vpop.f32.mrf.mxu0
        %v1049 = vadd.f32 0.0, %v1048
        %1050 = vmatmul.bf16.gmra.mxu0 %v242
        %v1051 = vpop.f32.mrf.mxu0
        %v1052 = vadd.f32 0.0, %v1051
        %v1053 = vpop.f32.mrf.mxu0
        %v1054 = vadd.f32 0.0, %v1053
        %1055 = vmatmul.bf16.gmra.mxu0 %v244
        %v1056 = vpop.f32.mrf.mxu0
        %v1057 = vadd.f32 0.0, %v1056
        %v1058 = vpop.f32.mrf.mxu0
        %v1059 = vadd.f32 0.0, %v1058
        %1060 = vmatmul.bf16.gmra.mxu0 %v246
        %v1061 = vpop.f32.mrf.mxu0
        %v1062 = vadd.f32 0.0, %v1061
        %v1063 = vpop.f32.mrf.mxu0
        %v1064 = vadd.f32 0.0, %v1063
        %1065 = vmatmul.bf16.gmra.mxu0 %v248
        %v1066 = vpop.f32.mrf.mxu0
        %v1067 = vadd.f32 0.0, %v1066
        %v1068 = vpop.f32.mrf.mxu0
        %v1069 = vadd.f32 0.0, %v1068
        %1070 = vdwg.mxu0
        %1071 = vmatpush.bf16.msra.mxu0 %v726
        %1072 = vmatpush.bf16.msra.mxu0 %v720
        %1073 = vmatpush.bf16.msra.mxu0 %v714
        %1074 = vmatpush.bf16.msra.mxu0 %v708
        %1075 = vmatpush.bf16.msra.mxu0 %v702
        %1076 = vmatpush.bf16.msra.mxu0 %v696
        %1077 = vmatpush.bf16.msra.mxu0 %v690
        %1078 = vmatpush.bf16.msra.mxu0 %v684
        %1079 = vmatmul.bf16.gmra.mxu0 %v235
        %v1080 = vpop.f32.mrf.mxu0
        %v1081 = vadd.f32 %v1032, %v1080
        %v1082 = vpop.f32.mrf.mxu0
        %v1083 = vadd.f32 %v1034, %v1082
        %1084 = vmatmul.bf16.gmra.mxu0 %v237
        %v1085 = vpop.f32.mrf.mxu0
        %v1086 = vadd.f32 %v1037, %v1085
        %v1087 = vpop.f32.mrf.mxu0
        %v1088 = vadd.f32 %v1039, %v1087
        %1089 = vmatmul.bf16.gmra.mxu0 %v239
        %v1090 = vpop.f32.mrf.mxu0
        %v1091 = vadd.f32 %v1042, %v1090
        %v1092 = vpop.f32.mrf.mxu0
        %v1093 = vadd.f32 %v1044, %v1092
        %1094 = vmatmul.bf16.gmra.mxu0 %v241
        %v1095 = vpop.f32.mrf.mxu0
        %v1096 = vadd.f32 %v1047, %v1095
        %v1097 = vpop.f32.mrf.mxu0
        %v1098 = vadd.f32 %v1049, %v1097
        %1099 = vmatmul.bf16.gmra.mxu0 %v243
        %v1100 = vpop.f32.mrf.mxu0
        %v1101 = vadd.f32 %v1052, %v1100
        %v1102 = vpop.f32.mrf.mxu0
        %v1103 = vadd.f32 %v1054, %v1102
        %1104 = vmatmul.bf16.gmra.mxu0 %v245
        %v1105 = vpop.f32.mrf.mxu0
        %v1106 = vadd.f32 %v1057, %v1105
        %v1107 = vpop.f32.mrf.mxu0
        %v1108 = vadd.f32 %v1059, %v1107
        %1109 = vmatmul.bf16.gmra.mxu0 %v247
        %v1110 = vpop.f32.mrf.mxu0
        %v1111 = vadd.f32 %v1062, %v1110
        %v1112 = vpop.f32.mrf.mxu0
        %v1113 = vadd.f32 %v1064, %v1112
        %1114 = vmatmul.bf16.gmra.mxu0 %v249
        %v1115 = vpop.f32.mrf.mxu0
        %v1116 = vadd.f32 %v1067, %v1115
        %v1117 = vpop.f32.mrf.mxu0
        %v1118 = vadd.f32 %v1069, %v1117
        %1119 = vdwg.mxu0
        %1120 = vmatpush.bf16.msra.mxu0 %v679
        %1121 = vmatpush.bf16.msra.mxu0 %v673
        %1122 = vmatpush.bf16.msra.mxu0 %v667
        %1123 = vmatpush.bf16.msra.mxu0 %v661
        %1124 = vmatpush.bf16.msra.mxu0 %v655
        %1125 = vmatpush.bf16.msra.mxu0 %v649
        %1126 = vmatpush.bf16.msra.mxu0 %v643
        %1127 = vmatpush.bf16.msra.mxu0 %v637
        %1128 = vmatmul.bf16.gmra.mxu0 %v234
        %v1129 = vpop.f32.mrf.mxu0
        %v1130 = vadd.f32 0.0, %v1129
        %v1131 = vpop.f32.mrf.mxu0
        %v1132 = vadd.f32 0.0, %v1131
        %1133 = vmatmul.bf16.gmra.mxu0 %v236
        %v1134 = vpop.f32.mrf.mxu0
        %v1135 = vadd.f32 0.0, %v1134
        %v1136 = vpop.f32.mrf.mxu0
        %v1137 = vadd.f32 0.0, %v1136
        %1138 = vmatmul.bf16.gmra.mxu0 %v238
        %v1139 = vpop.f32.mrf.mxu0
        %v1140 = vadd.f32 0.0, %v1139
        %v1141 = vpop.f32.mrf.mxu0
        %v1142 = vadd.f32 0.0, %v1141
        %1143 = vmatmul.bf16.gmra.mxu0 %v240
        %v1144 = vpop.f32.mrf.mxu0
        %v1145 = vadd.f32 0.0, %v1144
        %v1146 = vpop.f32.mrf.mxu0
        %v1147 = vadd.f32 0.0, %v1146
        %1148 = vmatmul.bf16.gmra.mxu0 %v242
        %v1149 = vpop.f32.mrf.mxu0
        %v1150 = vadd.f32 0.0, %v1149
        %v1151 = vpop.f32.mrf.mxu0
        %v1152 = vadd.f32 0.0, %v1151
        %1153 = vmatmul.bf16.gmra.mxu0 %v244
        %v1154 = vpop.f32.mrf.mxu0
        %v1155 = vadd.f32 0.0, %v1154
        %v1156 = vpop.f32.mrf.mxu0
        %v1157 = vadd.f32 0.0, %v1156
        %1158 = vmatmul.bf16.gmra.mxu0 %v246
        %v1159 = vpop.f32.mrf.mxu0
        %v1160 = vadd.f32 0.0, %v1159
        %v1161 = vpop.f32.mrf.mxu0
        %v1162 = vadd.f32 0.0, %v1161
        %1163 = vmatmul.bf16.gmra.mxu0 %v248
        %v1164 = vpop.f32.mrf.mxu0
        %v1165 = vadd.f32 0.0, %v1164
        %v1166 = vpop.f32.mrf.mxu0
        %v1167 = vadd.f32 0.0, %v1166
        %1168 = vdwg.mxu0
        %1169 = vmatpush.bf16.msra.mxu0 %v727
        %1170 = vmatpush.bf16.msra.mxu0 %v721
        %1171 = vmatpush.bf16.msra.mxu0 %v715
        %1172 = vmatpush.bf16.msra.mxu0 %v709
        %1173 = vmatpush.bf16.msra.mxu0 %v703
        %1174 = vmatpush.bf16.msra.mxu0 %v697
        %1175 = vmatpush.bf16.msra.mxu0 %v691
        %1176 = vmatpush.bf16.msra.mxu0 %v685
        %1177 = vmatmul.bf16.gmra.mxu0 %v235
        %v1178 = vpop.f32.mrf.mxu0
        %v1179 = vadd.f32 %v1130, %v1178
        %v1180 = vpop.f32.mrf.mxu0
        %v1181 = vadd.f32 %v1132, %v1180
        %1182 = vmatmul.bf16.gmra.mxu0 %v237
        %v1183 = vpop.f32.mrf.mxu0
        %v1184 = vadd.f32 %v1135, %v1183
        %v1185 = vpop.f32.mrf.mxu0
        %v1186 = vadd.f32 %v1137, %v1185
        %1187 = vmatmul.bf16.gmra.mxu0 %v239
        %v1188 = vpop.f32.mrf.mxu0
        %v1189 = vadd.f32 %v1140, %v1188
        %v1190 = vpop.f32.mrf.mxu0
        %v1191 = vadd.f32 %v1142, %v1190
        %1192 = vmatmul.bf16.gmra.mxu0 %v241
        %v1193 = vpop.f32.mrf.mxu0
        %v1194 = vadd.f32 %v1145, %v1193
        %v1195 = vpop.f32.mrf.mxu0
        %v1196 = vadd.f32 %v1147, %v1195
        %1197 = vmatmul.bf16.gmra.mxu0 %v243
        %v1198 = vpop.f32.mrf.mxu0
        %v1199 = vadd.f32 %v1150, %v1198
        %v1200 = vpop.f32.mrf.mxu0
        %v1201 = vadd.f32 %v1152, %v1200
        %1202 = vmatmul.bf16.gmra.mxu0 %v245
        %v1203 = vpop.f32.mrf.mxu0
        %v1204 = vadd.f32 %v1155, %v1203
        %v1205 = vpop.f32.mrf.mxu0
        %v1206 = vadd.f32 %v1157, %v1205
        %1207 = vmatmul.bf16.gmra.mxu0 %v247
        %v1208 = vpop.f32.mrf.mxu0
        %v1209 = vadd.f32 %v1160, %v1208
        %v1210 = vpop.f32.mrf.mxu0
        %v1211 = vadd.f32 %v1162, %v1210
        %1212 = vmatmul.bf16.gmra.mxu0 %v249
        %v1213 = vpop.f32.mrf.mxu0
        %v1214 = vadd.f32 %v1165, %v1213
        %v1215 = vpop.f32.mrf.mxu0
        %v1216 = vadd.f32 %v1167, %v1215
        %1217 = vdwg.mxu0
        %1218 = vmatpush.bf16.msra.mxu0 %v680
        %1219 = vmatpush.bf16.msra.mxu0 %v674
        %1220 = vmatpush.bf16.msra.mxu0 %v668
        %1221 = vmatpush.bf16.msra.mxu0 %v662
        %1222 = vmatpush.bf16.msra.mxu0 %v656
        %1223 = vmatpush.bf16.msra.mxu0 %v650
        %1224 = vmatpush.bf16.msra.mxu0 %v644
        %1225 = vmatpush.bf16.msra.mxu0 %v638
        %1226 = vmatmul.bf16.gmra.mxu0 %v234
        %v1227 = vpop.f32.mrf.mxu0
        %v1228 = vadd.f32 0.0, %v1227
        %v1229 = vpop.f32.mrf.mxu0
        %v1230 = vadd.f32 0.0, %v1229
        %1231 = vmatmul.bf16.gmra.mxu0 %v236
        %v1232 = vpop.f32.mrf.mxu0
        %v1233 = vadd.f32 0.0, %v1232
        %v1234 = vpop.f32.mrf.mxu0
        %v1235 = vadd.f32 0.0, %v1234
        %1236 = vmatmul.bf16.gmra.mxu0 %v238
        %v1237 = vpop.f32.mrf.mxu0
        %v1238 = vadd.f32 0.0, %v1237
        %v1239 = vpop.f32.mrf.mxu0
        %v1240 = vadd.f32 0.0, %v1239
        %1241 = vmatmul.bf16.gmra.mxu0 %v240
        %v1242 = vpop.f32.mrf.mxu0
        %v1243 = vadd.f32 0.0, %v1242
        %v1244 = vpop.f32.mrf.mxu0
        %v1245 = vadd.f32 0.0, %v1244
        %1246 = vmatmul.bf16.gmra.mxu0 %v242
        %v1247 = vpop.f32.mrf.mxu0
        %v1248 = vadd.f32 0.0, %v1247
        %v1249 = vpop.f32.mrf.mxu0
        %v1250 = vadd.f32 0.0, %v1249
        %1251 = vmatmul.bf16.gmra.mxu0 %v244
        %v1252 = vpop.f32.mrf.mxu0
        %v1253 = vadd.f32 0.0, %v1252
        %v1254 = vpop.f32.mrf.mxu0
        %v1255 = vadd.f32 0.0, %v1254
        %1256 = vmatmul.bf16.gmra.mxu0 %v246
        %v1257 = vpop.f32.mrf.mxu0
        %v1258 = vadd.f32 0.0, %v1257
        %v1259 = vpop.f32.mrf.mxu0
        %v1260 = vadd.f32 0.0, %v1259
        %1261 = vmatmul.bf16.gmra.mxu0 %v248
        %v1262 = vpop.f32.mrf.mxu0
        %v1263 = vadd.f32 0.0, %v1262
        %v1264 = vpop.f32.mrf.mxu0
        %v1265 = vadd.f32 0.0, %v1264
        %1266 = vdwg.mxu0
        %1267 = vmatpush.bf16.msra.mxu0 %v728
        %1268 = vmatpush.bf16.msra.mxu0 %v722
        %1269 = vmatpush.bf16.msra.mxu0 %v716
        %1270 = vmatpush.bf16.msra.mxu0 %v710
        %1271 = vmatpush.bf16.msra.mxu0 %v704
        %1272 = vmatpush.bf16.msra.mxu0 %v698
        %1273 = vmatpush.bf16.msra.mxu0 %v692
        %1274 = vmatpush.bf16.msra.mxu0 %v686
        %1275 = vmatmul.bf16.gmra.mxu0 %v235
        %v1276 = vpop.f32.mrf.mxu0
        %v1277 = vadd.f32 %v1228, %v1276
        %v1278 = vpop.f32.mrf.mxu0
        %v1279 = vadd.f32 %v1230, %v1278
        %1280 = vmatmul.bf16.gmra.mxu0 %v237
        %v1281 = vpop.f32.mrf.mxu0
        %v1282 = vadd.f32 %v1233, %v1281
        %v1283 = vpop.f32.mrf.mxu0
        %v1284 = vadd.f32 %v1235, %v1283
        %1285 = vmatmul.bf16.gmra.mxu0 %v239
        %v1286 = vpop.f32.mrf.mxu0
        %v1287 = vadd.f32 %v1238, %v1286
        %v1288 = vpop.f32.mrf.mxu0
        %v1289 = vadd.f32 %v1240, %v1288
        %1290 = vmatmul.bf16.gmra.mxu0 %v241
        %v1291 = vpop.f32.mrf.mxu0
        %v1292 = vadd.f32 %v1243, %v1291
        %v1293 = vpop.f32.mrf.mxu0
        %v1294 = vadd.f32 %v1245, %v1293
        %1295 = vmatmul.bf16.gmra.mxu0 %v243
        %v1296 = vpop.f32.mrf.mxu0
        %v1297 = vadd.f32 %v1248, %v1296
        %v1298 = vpop.f32.mrf.mxu0
        %v1299 = vadd.f32 %v1250, %v1298
        %1300 = vmatmul.bf16.gmra.mxu0 %v245
        %v1301 = vpop.f32.mrf.mxu0
        %v1302 = vadd.f32 %v1253, %v1301
        %v1303 = vpop.f32.mrf.mxu0
        %v1304 = vadd.f32 %v1255, %v1303
        %1305 = vmatmul.bf16.gmra.mxu0 %v247
        %v1306 = vpop.f32.mrf.mxu0
        %v1307 = vadd.f32 %v1258, %v1306
        %v1308 = vpop.f32.mrf.mxu0
        %v1309 = vadd.f32 %v1260, %v1308
        %1310 = vmatmul.bf16.gmra.mxu0 %v249
        %v1311 = vpop.f32.mrf.mxu0
        %v1312 = vadd.f32 %v1263, %v1311
        %v1313 = vpop.f32.mrf.mxu0
        %v1314 = vadd.f32 %v1265, %v1313
        %1315 = vdwg.mxu0
        %1316 = vmatpush.bf16.msra.mxu0 %v681
        %1317 = vmatpush.bf16.msra.mxu0 %v675
        %1318 = vmatpush.bf16.msra.mxu0 %v669
        %1319 = vmatpush.bf16.msra.mxu0 %v663
        %1320 = vmatpush.bf16.msra.mxu0 %v657
        %1321 = vmatpush.bf16.msra.mxu0 %v651
        %1322 = vmatpush.bf16.msra.mxu0 %v645
        %1323 = vmatpush.bf16.msra.mxu0 %v639
        %1324 = vmatmul.bf16.gmra.mxu0 %v234
        %v1325 = vpop.f32.mrf.mxu0
        %v1326 = vadd.f32 0.0, %v1325
        %v1327 = vpop.f32.mrf.mxu0
        %v1328 = vadd.f32 0.0, %v1327
        %1329 = vmatmul.bf16.gmra.mxu0 %v236
        %v1330 = vpop.f32.mrf.mxu0
        %v1331 = vadd.f32 0.0, %v1330
        %v1332 = vpop.f32.mrf.mxu0
        %v1333 = vadd.f32 0.0, %v1332
        %1334 = vmatmul.bf16.gmra.mxu0 %v238
        %v1335 = vpop.f32.mrf.mxu0
        %v1336 = vadd.f32 0.0, %v1335
        %v1337 = vpop.f32.mrf.mxu0
        %v1338 = vadd.f32 0.0, %v1337
        %1339 = vmatmul.bf16.gmra.mxu0 %v240
        %v1340 = vpop.f32.mrf.mxu0
        %v1341 = vadd.f32 0.0, %v1340
        %v1342 = vpop.f32.mrf.mxu0
        %v1343 = vadd.f32 0.0, %v1342
        %1344 = vmatmul.bf16.gmra.mxu0 %v242
        %v1345 = vpop.f32.mrf.mxu0
        %v1346 = vadd.f32 0.0, %v1345
        %v1347 = vpop.f32.mrf.mxu0
        %v1348 = vadd.f32 0.0, %v1347
        %1349 = vmatmul.bf16.gmra.mxu0 %v244
        %v1350 = vpop.f32.mrf.mxu0
        %v1351 = vadd.f32 0.0, %v1350
        %v1352 = vpop.f32.mrf.mxu0
        %v1353 = vadd.f32 0.0, %v1352
        %1354 = vmatmul.bf16.gmra.mxu0 %v246
        %v1355 = vpop.f32.mrf.mxu0
        %v1356 = vadd.f32 0.0, %v1355
        %v1357 = vpop.f32.mrf.mxu0
        %v1358 = vadd.f32 0.0, %v1357
        %1359 = vmatmul.bf16.gmra.mxu0 %v248
        %v1360 = vpop.f32.mrf.mxu0
        %v1361 = vadd.f32 0.0, %v1360
        %v1362 = vpop.f32.mrf.mxu0
        %v1363 = vadd.f32 0.0, %v1362
        %1364 = vdwg.mxu0
        %1365 = vmatpush.bf16.msra.mxu0 %v729
        %1366 = vmatpush.bf16.msra.mxu0 %v723
        %1367 = vmatpush.bf16.msra.mxu0 %v717
        %1368 = vmatpush.bf16.msra.mxu0 %v711
        %1369 = vmatpush.bf16.msra.mxu0 %v705
        %1370 = vmatpush.bf16.msra.mxu0 %v699
        %1371 = vmatpush.bf16.msra.mxu0 %v693
        %1372 = vmatpush.bf16.msra.mxu0 %v687
        %1373 = vmatmul.bf16.gmra.mxu0 %v235
        %v1374 = vpop.f32.mrf.mxu0
        %v1375 = vadd.f32 %v1326, %v1374
        %v1376 = vpop.f32.mrf.mxu0
        %v1377 = vadd.f32 %v1328, %v1376
        %1378 = vmatmul.bf16.gmra.mxu0 %v237
        %v1379 = vpop.f32.mrf.mxu0
        %v1380 = vadd.f32 %v1331, %v1379
        %v1381 = vpop.f32.mrf.mxu0
        %v1382 = vadd.f32 %v1333, %v1381
        %1383 = vmatmul.bf16.gmra.mxu0 %v239
        %v1384 = vpop.f32.mrf.mxu0
        %v1385 = vadd.f32 %v1336, %v1384
        %v1386 = vpop.f32.mrf.mxu0
        %v1387 = vadd.f32 %v1338, %v1386
        %1388 = vmatmul.bf16.gmra.mxu0 %v241
        %v1389 = vpop.f32.mrf.mxu0
        %v1390 = vadd.f32 %v1341, %v1389
        %v1391 = vpop.f32.mrf.mxu0
        %v1392 = vadd.f32 %v1343, %v1391
        %1393 = vmatmul.bf16.gmra.mxu0 %v243
        %v1394 = vpop.f32.mrf.mxu0
        %v1395 = vadd.f32 %v1346, %v1394
        %v1396 = vpop.f32.mrf.mxu0
        %v1397 = vadd.f32 %v1348, %v1396
        %1398 = vmatmul.bf16.gmra.mxu0 %v245
        %v1399 = vpop.f32.mrf.mxu0
        %v1400 = vadd.f32 %v1351, %v1399
        %v1401 = vpop.f32.mrf.mxu0
        %v1402 = vadd.f32 %v1353, %v1401
        %1403 = vmatmul.bf16.gmra.mxu0 %v247
        %v1404 = vpop.f32.mrf.mxu0
        %v1405 = vadd.f32 %v1356, %v1404
        %v1406 = vpop.f32.mrf.mxu0
        %v1407 = vadd.f32 %v1358, %v1406
        %1408 = vmatmul.bf16.gmra.mxu0 %v249
        %v1409 = vpop.f32.mrf.mxu0
        %v1410 = vadd.f32 %v1361, %v1409
        %v1411 = vpop.f32.mrf.mxu0
        %v1412 = vadd.f32 %v1363, %v1411
        %1413 = vdwg.mxu0
        %v1414 = vpack.c.bf16 %v983, %v885
        %v1415 = vpack.c.bf16 %v1179, %v1081
        %v1416 = vpack.c.bf16 %v1375, %v1277
        %v1417 = vpack.c.bf16 %v985, %v887
        %v1418 = vpack.c.bf16 %v1181, %v1083
        %v1419 = vpack.c.bf16 %v1377, %v1279
        %v1420 = vpack.c.bf16 %v988, %v890
        %v1421 = vpack.c.bf16 %v1184, %v1086
        %v1422 = vpack.c.bf16 %v1380, %v1282
        %v1423 = vpack.c.bf16 %v990, %v892
        %v1424 = vpack.c.bf16 %v1186, %v1088
        %v1425 = vpack.c.bf16 %v1382, %v1284
        %v1426 = vpack.c.bf16 %v993, %v895
        %v1427 = vpack.c.bf16 %v1189, %v1091
        %v1428 = vpack.c.bf16 %v1385, %v1287
        %v1429 = vpack.c.bf16 %v995, %v897
        %v1430 = vpack.c.bf16 %v1191, %v1093
        %v1431 = vpack.c.bf16 %v1387, %v1289
        %v1432 = vpack.c.bf16 %v998, %v900
        %v1433 = vpack.c.bf16 %v1194, %v1096
        %v1434 = vpack.c.bf16 %v1390, %v1292
        %v1435 = vpack.c.bf16 %v1000, %v902
        %v1436 = vpack.c.bf16 %v1196, %v1098
        %v1437 = vpack.c.bf16 %v1392, %v1294
        %v1438 = vpack.c.bf16 %v1003, %v905
        %v1439 = vpack.c.bf16 %v1199, %v1101
        %v1440 = vpack.c.bf16 %v1395, %v1297
        %v1441 = vpack.c.bf16 %v1005, %v907
        %v1442 = vpack.c.bf16 %v1201, %v1103
        %v1443 = vpack.c.bf16 %v1397, %v1299
        %v1444 = vpack.c.bf16 %v1008, %v910
        %v1445 = vpack.c.bf16 %v1204, %v1106
        %v1446 = vpack.c.bf16 %v1400, %v1302
        %v1447 = vpack.c.bf16 %v1010, %v912
        %v1448 = vpack.c.bf16 %v1206, %v1108
        %v1449 = vpack.c.bf16 %v1402, %v1304
        %v1450 = vpack.c.bf16 %v1013, %v915
        %v1451 = vpack.c.bf16 %v1209, %v1111
        %v1452 = vpack.c.bf16 %v1405, %v1307
        %v1453 = vpack.c.bf16 %v1015, %v917
        %v1454 = vpack.c.bf16 %v1211, %v1113
        %v1455 = vpack.c.bf16 %v1407, %v1309
        %v1456 = vpack.c.bf16 %v1018, %v920
        %v1457 = vpack.c.bf16 %v1214, %v1116
        %v1458 = vpack.c.bf16 %v1410, %v1312
        %v1459 = vpack.c.bf16 %v1020, %v922
        %v1460 = vpack.c.bf16 %v1216, %v1118
        %v1461 = vpack.c.bf16 %v1412, %v1314
        %1462 = vst [vmem:[%s199] sm:$0xff] %v1414
        %1463 = vst [vmem:[%s199 + $0x8] sm:$0xff] %v1415
        %1464 = vst [vmem:[%s199 + $0x10] sm:$0xff] %v1416
        %1465 = vst [vmem:[%s199 + $0x18] sm:$0xff] %v1417
        %1466 = vst [vmem:[%s199 + $0x20] sm:$0xff] %v1418
        %1467 = vst [vmem:[%s199 + $0x28] sm:$0xff] %v1419
        %1468 = vst [vmem:[%s199 + $0x30] sm:$0xff] %v1420
        %1469 = vst [vmem:[%s199 + $0x38] sm:$0xff] %v1421
        %1470 = vst [vmem:[%s199 + $0x40] sm:$0xff] %v1422
        %1471 = vst [vmem:[%s199 + $0x48] sm:$0xff] %v1423
        %1472 = vst [vmem:[%s199 + $0x50] sm:$0xff] %v1424
        %1473 = vst [vmem:[%s199 + $0x58] sm:$0xff] %v1425
        %1474 = vst [vmem:[%s199 + $0x60] sm:$0xff] %v1426
        %1475 = vst [vmem:[%s199 + $0x68] sm:$0xff] %v1427
        %1476 = vst [vmem:[%s199 + $0x70] sm:$0xff] %v1428
        %1477 = vst [vmem:[%s199 + $0x78] sm:$0xff] %v1429
        %1478 = vst [vmem:[%s199 + $0x80] sm:$0xff] %v1430
        %1479 = vst [vmem:[%s199 + $0x88] sm:$0xff] %v1431
        %1480 = vst [vmem:[%s199 + $0x90] sm:$0xff] %v1432
        %1481 = vst [vmem:[%s199 + $0x98] sm:$0xff] %v1433
        %1482 = vst [vmem:[%s199 + $0xa0] sm:$0xff] %v1434
        %1483 = vst [vmem:[%s199 + $0xa8] sm:$0xff] %v1435
        %1484 = vst [vmem:[%s199 + $0xb0] sm:$0xff] %v1436
        %1485 = vst [vmem:[%s199 + $0xb8] sm:$0xff] %v1437
        %1486 = vst [vmem:[%s199 + $0xc0] sm:$0xff] %v1438
        %1487 = vst [vmem:[%s199 + $0xc8] sm:$0xff] %v1439
        %1488 = vst [vmem:[%s199 + $0xd0] sm:$0xff] %v1440
        %1489 = vst [vmem:[%s199 + $0xd8] sm:$0xff] %v1441
        %1490 = vst [vmem:[%s199 + $0xe0] sm:$0xff] %v1442
        %1491 = vst [vmem:[%s199 + $0xe8] sm:$0xff] %v1443
        %1492 = vst [vmem:[%s199 + $0xf0] sm:$0xff] %v1444
        %1493 = vst [vmem:[%s199 + $0xf8] sm:$0xff] %v1445
        %1494 = vst [vmem:[%s199 + $0x100] sm:$0xff] %v1446
        %1495 = vst [vmem:[%s199 + $0x108] sm:$0xff] %v1447
        %1496 = vst [vmem:[%s199 + $0x110] sm:$0xff] %v1448
        %1497 = vst [vmem:[%s199 + $0x118] sm:$0xff] %v1449
        %1498 = vst [vmem:[%s199 + $0x120] sm:$0xff] %v1450
        %1499 = vst [vmem:[%s199 + $0x128] sm:$0xff] %v1451
        %1500 = vst [vmem:[%s199 + $0x130] sm:$0xff] %v1452
        %1501 = vst [vmem:[%s199 + $0x138] sm:$0xff] %v1453
        %1502 = vst [vmem:[%s199 + $0x140] sm:$0xff] %v1454
        %1503 = vst [vmem:[%s199 + $0x148] sm:$0xff] %v1455
        %1504 = vst [vmem:[%s199 + $0x150] sm:$0xff] %v1456
        %1505 = vst [vmem:[%s199 + $0x158] sm:$0xff] %v1457
        %1506 = vst [vmem:[%s199 + $0x160] sm:$0xff] %v1458
        %1507 = vst [vmem:[%s199 + $0x168] sm:$0xff] %v1459
        %1508 = vst [vmem:[%s199 + $0x170] sm:$0xff] %v1460
        %1509 = vst [vmem:[%s199 + $0x178] sm:$0xff] %v1461
        %s1510 = sand.u32 %s91, 1
        %s1511 = scalar_lea.sflag [#allocation4], %s1510
        %s1512 = sand.u32 %s91, 1
        %s1513 = smul.addr %s1512, 384
        %s1514 = scalar_lea.vmem [#allocation7], %s1513
        // Predicated region
        $region37: #{tpu_custom_call.1} parent=27 // pred_check
          %p1515 = pneg %p101
        $region38: #{tpu_custom_call.1} parent=27 // pred_check_branch
          %1517 = sbr.rel (%p1515) target = $region40
        $region39: #{tpu_custom_call.1} parent=27 // pred_region
          %s1518 = smul.u32 16, %s25
          %1520 = vsyncadd %s1511, 0
          %s1521 = smul.addr %s1518, 6
          %s1522 = smul.addr %s24, 96
          %s1523 = sadd.s32 %s1521, %s1522
          %s1524 = smul.addr %s1523, 4
          %s1525 = scalar_lea.hbm %s2, %s1524
          %s1526 = sshll.u32 %s1514, 4
          %s1527 = int_to_ptr.vmem [resolvable:$true] %s1526
          %s1528 = sshll.u32 %s1525, 4
          %s1529 = int_to_ptr.hbm [resolvable:$true] %s1528
          %1534 = dma.vmem_to_hbm [thread:$0]  %s1527, 6144, %s1529, %s1511, 384, 384, 24
        $region40: #{tpu_custom_call.1} parent=27 // pred_fallthru
          _
      $region28: #{tpu_custom_call.1} parent=5 // pred_fallthru
        _
      %p1535 = scmp.le.s32.totalorder 2, %s15
      // Predicated region
      $region41: #{tpu_custom_call.1} parent=5 // pred_check
        %p1536 = pneg %p1535
      $region42: #{tpu_custom_call.1} parent=5 // pred_check_branch
        %1538 = sbr.rel (%p1536) target = $region44
      $region43: #{tpu_custom_call.1} parent=5 // pred_region
        %s1539 = ssub.s32 %s15, 2
        // Predicated region
        $region45: #{tpu_custom_call.1} parent=43 // pred_check
          %p1540 = pneg %p107
        $region46: #{tpu_custom_call.1} parent=43 // pred_check_branch
          %1542 = sbr.rel (%p1540) target = $region48
        $region47: #{tpu_custom_call.1} parent=43 // pred_region
          %s1543 = sand.u32 %s92, 1
          %s1544 = scalar_lea.sflag [#allocation4], %s1543
          %s1545 = sand.u32 %s92, 1
          %s1546 = smul.addr %s1545, 384
          %s1547 = scalar_lea.vmem [#allocation7], %s1546
          %1549 = dma.done %s1544, 6144
        $region48: #{tpu_custom_call.1} parent=43 // pred_fallthru
          _
      $region44: #{tpu_custom_call.1} parent=5 // pred_fallthru
        _
    $region6: #{tpu_custom_call.1} parent=1 // loop_footer
      %s19 = sadd.s32 1, %s15
    $region7: #{tpu_custom_call.1} parent=1 // loop_footer_branch
      %14 = sbr.rel target = $region3
    $region8: #{tpu_custom_call.1} parent=1 // loop_exit
      _
    %1550 = vsyncpa [#allocation3], 1
    %s1551 = scalar_lea.sflag [#allocation3], 1
    %1552 = vsyncpa %s1551, 1
    %1553 = vsyncpa [#allocation6], 1
    %1554 = vsyncpa [#allocation4], 1
    %s1555 = scalar_lea.sflag [#allocation4], 1
    %1556 = vsyncpa %s1555, 1

</llo_original>
